<compile_context>
chip_gen: v7x
topology: tpu7x:2x2x1
jax: 0.10.0
libtpu: 0.0.40
codegen_flags: <defaults>
</compile_context>

<pallas_src>
import functools

import jax
import jax.numpy as jnp
from jax.experimental import pallas as pl
from jax.experimental.pallas import tpu as pltpu


def _ce2d_kernel(logits_ref, tgt_ref, num_ref, cnt_ref, num_acc, cnt_acc, *,
                 hw, ns_per_split, ignore_index):
    p = pl.program_id(0)          # spatial split (megacore) index
    s = pl.program_id(2)          # spatial tile index within this split

    @pl.when(s == 0)
    def _():
        num_acc[...] = jnp.zeros_like(num_acc)
        cnt_acc[...] = jnp.zeros_like(cnt_acc)

    x = logits_ref[0].astype(jnp.float32)            # (C, thw)  channels on sublanes
    tgt = tgt_ref[0]                                 # (1, thw)  pixels on lanes
    C, thw = x.shape

    g = p * ns_per_split + s                         # global spatial tile index

    # log-softmax along the channel (sublane) axis; pick the target-class
    # value from `z` directly so the full (C, thw) logp tensor is never formed.
    m = jnp.max(x, axis=0, keepdims=True)            # (1, thw)
    z = x - m
    lse = jnp.log(jnp.sum(jnp.exp(z), axis=0, keepdims=True))   # (1, thw)

    ch = jax.lax.broadcasted_iota(jnp.int32, (C, 1), 0)          # (C, 1) sublane iota
    picked_z = jnp.sum(jnp.where(ch == tgt, z, 0.0),
                       axis=0, keepdims=True)        # (1, thw)
    neg_logp_t = lse - picked_z                      # (1, thw) = -log p(target)

    valid_t = tgt != ignore_index                    # (1, thw)

    # Lane-bounds masking is only needed on the (at most one) partial tile and
    # on fully out-of-range tiles of the second split; skip the iota elsewhere.
    full_tile = (g + 1) * thw <= hw

    @pl.when(full_tile)
    def _():
        num_acc[...] += jnp.where(valid_t, neg_logp_t, 0.0)
        cnt_acc[...] += valid_t.astype(jnp.float32)

    @pl.when(jnp.logical_not(full_tile))
    def _():
        lane = jax.lax.broadcasted_iota(jnp.int32, (1, thw), 1)
        valid = jnp.logical_and(g * thw + lane < hw, valid_t)
        # NOTE: masked lanes may hold garbage (padded / clamped block); keep
        # the select (jnp.where), never multiply by the mask.
        num_acc[...] += jnp.where(valid, neg_logp_t, 0.0)
        cnt_acc[...] += valid.astype(jnp.float32)

    @pl.when(s == pl.num_programs(2) - 1)
    def _():
        num_ref[...] = jnp.sum(num_acc[...]).reshape(1, 1, 1, 1)
        cnt_ref[...] = jnp.sum(cnt_acc[...]).reshape(1, 1, 1, 1)


def cross_entropy_loss_2d(outputs, targets, *, ignore_index=-100,
                          max_lanes=131072):
    """outputs: [N, C, H, W] float logits; targets: [N, H, W] int class ids.

    Matches nn.NLLLoss2d(weight=None)(F.log_softmax(outputs, dim=1), targets)
    (mean over non-ignored pixels, default ignore_index=-100).

    Notes:
      * If every pixel is ignore_index the result is NaN (0/0), matching
        PyTorch's mean-reduction behavior.
      * Out-of-range targets that are not ignore_index contribute 0 to the
        numerator but are counted in the denominator (PyTorch would assert).
    """
    # TODO(synk): per-class `weight` (optional NLLLoss2d arg) not implemented;
    # matches the default weight=None construction of the reference module.
    N, C, H, W = outputs.shape
    HW = H * W

    x = outputs.reshape(N, C, HW)                    # free, contiguous, native dtype
    t = targets.reshape(N, 1, HW).astype(jnp.int32)

    # --- lane-tile sizing against the actual VMEM capacity (v7x: 64 MiB) ---
    try:
        info = pltpu.get_tpu_info()
        vmem_cap = int(getattr(info, "vmem_capacity_bytes", 64 * 1024 * 1024))
    except Exception:
        vmem_cap = 64 * 1024 * 1024
    vmem_limit = int(min(vmem_cap * 3 // 4, 64 * 1024 * 1024))

    itemsize = jnp.dtype(outputs.dtype).itemsize
    # per-lane bytes: 2x logits blocks (double buffered) + 2x int32 target
    # blocks + 2x f32 lane accumulators + ~4 f32 (C, thw) fused temporaries.
    per_lane = 2 * C * itemsize + 2 * 4 + 2 * 4 + 4 * C * 4
    budget = vmem_limit // 2                         # leave headroom
    thw = budget // per_lane // 128 * 128
    thw = max(128, min(thw, max_lanes))
    if thw >= HW:
        thw = HW                                     # full-extent block is always legal
        n_s = 1
    else:
        n_s = pl.cdiv(HW, thw)                       # tail tile masked in-kernel

    # --- split spatial tiles across a leading parallel axis (v7x megacore) ---
    P = 2 if n_s >= 2 else 1
    ns_per_split = pl.cdiv(n_s, P)

    def _sblk(p, s):
        # clamp so the DMA stays in-bounds on the (masked) overhang tiles
        return jnp.minimum(p * ns_per_split + s, n_s - 1)

    kernel = functools.partial(_ce2d_kernel, hw=HW, ns_per_split=ns_per_split,
                               ignore_index=ignore_index)

    num, cnt = pl.pallas_call(
        kernel,
        out_shape=(jax.ShapeDtypeStruct((P, N, 1, 1), jnp.float32),
                   jax.ShapeDtypeStruct((P, N, 1, 1), jnp.float32)),
        grid_spec=pltpu.PrefetchScalarGridSpec(
            num_scalar_prefetch=0,
            grid=(P, N, ns_per_split),
            in_specs=[
                pl.BlockSpec((1, C, thw), lambda p, n, s: (n, 0, _sblk(p, s))),
                pl.BlockSpec((1, 1, thw), lambda p, n, s: (n, 0, _sblk(p, s))),
            ],
            out_specs=(
                pl.BlockSpec((1, 1, 1, 1), lambda p, n, s: (p, n, 0, 0)),
                pl.BlockSpec((1, 1, 1, 1), lambda p, n, s: (p, n, 0, 0)),
            ),
            scratch_shapes=[
                pltpu.VMEM((1, thw), jnp.float32),   # -logp(target) lane accumulator
                pltpu.VMEM((1, thw), jnp.float32),   # valid-pixel count accumulator
            ],
        ),
        compiler_params=pltpu.CompilerParams(
            dimension_semantics=("parallel", "parallel", "arbitrary"),
            vmem_limit_bytes=vmem_limit,
        ),
    )(x, t)

    return jnp.sum(num) / jnp.sum(cnt)


def _reference(outputs, targets, ignore_index=-100):
    # pure-JAX reference: mean NLL of log_softmax over the channel axis
    logp = jax.nn.log_softmax(outputs.astype(jnp.float32), axis=1)  # (N,C,H,W)
    C = outputs.shape[1]
    safe_t = jnp.clip(targets, 0, C - 1).astype(jnp.int32)
    picked = jnp.take_along_axis(logp, safe_t[:, None, :, :], axis=1)[:, 0]
    mask = targets != ignore_index
    return -jnp.sum(jnp.where(mask, picked, 0.0)) / jnp.sum(mask)


if __name__ == "__main__":
    key = jax.random.PRNGKey(0)
    k1, k2, k3, k4, k5 = jax.random.split(key, 5)

    # main check: small shape consistent with the module (NCHW logits, NHW targets)
    N, C, H, W = 2, 4, 16, 16
    outputs = jax.random.normal(k1, (N, C, H, W), dtype=jnp.float32)
    targets = jax.random.randint(k2, (N, H, W), 0, C, dtype=jnp.int32)

    loss = jax.block_until_ready(cross_entropy_loss_2d(outputs, targets))
    ref = _reference(outputs, targets)
    assert jnp.allclose(loss, ref, atol=1e-5, rtol=1e-5), (loss, ref)

    # extra check: small lane tiles so the tail-mask, spatial-split and
    # ignore_index paths are all exercised (HW=320, thw=128 -> n_s=3, P=2).
    H2, W2 = 16, 20
    outputs2 = jax.random.normal(k3, (N, C, H2, W2), dtype=jnp.float32)
    targets2 = jax.random.randint(k4, (N, H2, W2), 0, C, dtype=jnp.int32)
    drop = jax.random.uniform(k5, (N, H2, W2)) < 0.1
    targets2 = jnp.where(drop, -100, targets2)
    loss2 = jax.block_until_ready(
        cross_entropy_loss_2d(outputs2, targets2, max_lanes=128))
    ref2 = _reference(outputs2, targets2)
    assert jnp.allclose(loss2, ref2, atol=1e-5, rtol=1e-5), (loss2, ref2)

    print("KERNEL_OK")
</pallas_src>

<mosaic_0001>
module attributes {stable_mosaic.version = 11 : i64} {
  func.func @_ce2d_kernel(%arg0: i32, %arg1: i32, %arg2: i32, %arg3: memref<1x4x256xf32, #tpu.memory_space<vmem>>, %arg4: memref<1x1x256xi32, #tpu.memory_space<vmem>>, %arg5: memref<1x1x1x1xf32, #tpu.memory_space<vmem>>, %arg6: memref<1x1x1x1xf32, #tpu.memory_space<vmem>>, %arg7: memref<1x256xf32, #tpu.memory_space<vmem>>, %arg8: memref<1x256xf32, #tpu.memory_space<vmem>>) attributes {dimension_semantics = [#tpu.dimension_semantics<parallel>, #tpu.dimension_semantics<parallel>, #tpu.dimension_semantics<arbitrary>], iteration_bounds = array<i64: 1, 2, 1>, scalar_prefetch = 0 : i64, scratch_operands = 2 : i64, tpu.core_type = #tpu.core_type<tc>, window_params = [{transform_indices = @transform_0, window_bounds = array<i64: 1, 4, 256>}, {transform_indices = @transform_1, window_bounds = array<i64: 1, 1, 256>}, {transform_indices = @transform_2, window_bounds = array<i64: 1, 1, 1, 1>}, {transform_indices = @transform_3, window_bounds = array<i64: 1, 1, 1, 1>}]} {
    %c0_i32 = arith.constant 0 : i32
    %0 = arith.cmpi eq, %arg2, %c0_i32 : i32
    %1 = arith.extui %0 : i1 to i32
    %c0_i32_0 = arith.constant 0 : i32
    %2 = arith.cmpi ne, %1, %c0_i32_0 : i32
    scf.if %2 {
      %cst_15 = arith.constant 0.000000e+00 : f32
      %39 = vector.broadcast %cst_15 : f32 to vector<1x256xf32>
      %c0_16 = arith.constant 0 : index
      %c0_17 = arith.constant 0 : index
      %40 = vector.load %arg7[%c0_16, %c0_17] : memref<1x256xf32, #tpu.memory_space<vmem>>, vector<1x256xf32>
      tpu.vector_store %arg7[%c0_16, %c0_17], %39 {strides = array<i32>} : memref<1x256xf32, #tpu.memory_space<vmem>>, vector<1x256xf32>,
      %cst_18 = arith.constant 0.000000e+00 : f32
      %41 = vector.broadcast %cst_18 : f32 to vector<1x256xf32>
      %c0_19 = arith.constant 0 : index
      %c0_20 = arith.constant 0 : index
      %42 = vector.load %arg8[%c0_19, %c0_20] : memref<1x256xf32, #tpu.memory_space<vmem>>, vector<1x256xf32>
      tpu.vector_store %arg8[%c0_19, %c0_20], %41 {strides = array<i32>} : memref<1x256xf32, #tpu.memory_space<vmem>>, vector<1x256xf32>,
    } else {
    }
    %c0 = arith.constant 0 : index
    %c0_1 = arith.constant 0 : index
    %c0_2 = arith.constant 0 : index
    %3 = vector.load %arg3[%c0, %c0_1, %c0_2] : memref<1x4x256xf32, #tpu.memory_space<vmem>>, vector<1x4x256xf32>
    %4 = vector.shape_cast %3 : vector<1x4x256xf32> to vector<4x256xf32>
    %c0_3 = arith.constant 0 : index
    %c0_4 = arith.constant 0 : index
    %c0_5 = arith.constant 0 : index
    %5 = vector.load %arg4[%c0_3, %c0_4, %c0_5] : memref<1x1x256xi32, #tpu.memory_space<vmem>>, vector<1x1x256xi32>
    %6 = vector.shape_cast %5 : vector<1x1x256xi32> to vector<1x256xi32>
    %c1_i32 = arith.constant 1 : i32
    %7 = arith.muli %arg0, %c1_i32 : i32
    %8 = arith.addi %7, %arg2 : i32
    %cst = arith.constant dense<0xFF800000> : vector<256xf32>
    %9 = vector.multi_reduction <maximumf>, %4, %cst [0] : vector<4x256xf32> to vector<256xf32>
    %10 = vector.shape_cast %9 : vector<256xf32> to vector<1x256xf32>
    %11 = vector.broadcast %10 : vector<1x256xf32> to vector<4x256xf32>
    %12 = arith.subf %4, %11 : vector<4x256xf32>
    %13 = math.exp %12 : vector<4x256xf32>
    %cst_6 = arith.constant dense<0.000000e+00> : vector<256xf32>
    %14 = vector.multi_reduction <add>, %13, %cst_6 [0] : vector<4x256xf32> to vector<256xf32>
    %15 = vector.shape_cast %14 : vector<256xf32> to vector<1x256xf32>
    %16 = math.log %15 : vector<1x256xf32>
    %17 = tpu.iota {dimensions = array<i32: 0>} : vector<4x1xi32>
    %18 = vector.broadcast %17 : vector<4x1xi32> to vector<4x256xi32>
    %19 = vector.broadcast %6 : vector<1x256xi32> to vector<4x256xi32>
    %20 = arith.cmpi eq, %18, %19 : vector<4x256xi32>
    %cst_7 = arith.constant 0.000000e+00 : f32
    %21 = vector.broadcast %cst_7 : f32 to vector<4x256xf32>
    %22 = arith.select %20, %12, %21 : vector<4x256xi1>, vector<4x256xf32>
    %cst_8 = arith.constant dense<0.000000e+00> : vector<256xf32>
    %23 = vector.multi_reduction <add>, %22, %cst_8 [0] : vector<4x256xf32> to vector<256xf32>
    %24 = vector.shape_cast %23 : vector<256xf32> to vector<1x256xf32>
    %25 = arith.subf %16, %24 : vector<1x256xf32>
    %c-100_i32 = arith.constant -100 : i32
    %26 = vector.broadcast %c-100_i32 : i32 to vector<1x256xi32>
    %27 = arith.cmpi ne, %6, %26 : vector<1x256xi32>
    %c1_i32_9 = arith.constant 1 : i32
    %28 = arith.addi %8, %c1_i32_9 : i32
    %c256_i32 = arith.constant 256 : i32
    %29 = arith.muli %28, %c256_i32 : i32
    %c256_i32_10 = arith.constant 256 : i32
    %30 = arith.cmpi sle, %29, %c256_i32_10 : i32
    %31 = arith.extui %30 : i1 to i32
    %c0_i32_11 = arith.constant 0 : i32
    %32 = arith.cmpi ne, %31, %c0_i32_11 : i32
    scf.if %32 {
      %c0_15 = arith.constant 0 : index
      %c0_16 = arith.constant 0 : index
      %39 = vector.load %arg7[%c0_15, %c0_16] : memref<1x256xf32, #tpu.memory_space<vmem>>, vector<1x256xf32>
      %cst_17 = arith.constant 0.000000e+00 : f32
      %40 = vector.broadcast %cst_17 : f32 to vector<1x256xf32>
      %41 = arith.select %27, %25, %40 : vector<1x256xi1>, vector<1x256xf32>
      %42 = arith.addf %39, %41 : vector<1x256xf32>
      %c0_18 = arith.constant 0 : index
      %c0_19 = arith.constant 0 : index
      %43 = vector.load %arg7[%c0_18, %c0_19] : memref<1x256xf32, #tpu.memory_space<vmem>>, vector<1x256xf32>
      tpu.vector_store %arg7[%c0_18, %c0_19], %42 {strides = array<i32>} : memref<1x256xf32, #tpu.memory_space<vmem>>, vector<1x256xf32>,
      %c0_20 = arith.constant 0 : index
      %c0_21 = arith.constant 0 : index
      %44 = vector.load %arg8[%c0_20, %c0_21] : memref<1x256xf32, #tpu.memory_space<vmem>>, vector<1x256xf32>
      %45 = arith.extui %27 : vector<1x256xi1> to vector<1x256xi32>
      %46 = arith.sitofp %45 : vector<1x256xi32> to vector<1x256xf32>
      %47 = arith.addf %44, %46 : vector<1x256xf32>
      %c0_22 = arith.constant 0 : index
      %c0_23 = arith.constant 0 : index
      %48 = vector.load %arg8[%c0_22, %c0_23] : memref<1x256xf32, #tpu.memory_space<vmem>>, vector<1x256xf32>
      tpu.vector_store %arg8[%c0_22, %c0_23], %47 {strides = array<i32>} : memref<1x256xf32, #tpu.memory_space<vmem>>, vector<1x256xf32>,
    } else {
    }
    %true = arith.constant true
    %33 = arith.xori %30, %true : i1
    %34 = arith.extui %33 : i1 to i32
    %c0_i32_12 = arith.constant 0 : i32
    %35 = arith.cmpi ne, %34, %c0_i32_12 : i32
    scf.if %35 {
      %39 = tpu.iota {dimensions = array<i32: 1>} : vector<1x256xi32>
      %c256_i32_15 = arith.constant 256 : i32
      %40 = arith.muli %8, %c256_i32_15 : i32
      %41 = vector.broadcast %40 : i32 to vector<1x256xi32>
      %42 = arith.addi %41, %39 : vector<1x256xi32>
      %c256_i32_16 = arith.constant 256 : i32
      %43 = vector.broadcast %c256_i32_16 : i32 to vector<1x256xi32>
      %44 = arith.cmpi slt, %42, %43 : vector<1x256xi32>
      %45 = arith.andi %44, %27 : vector<1x256xi1>
      %c0_17 = arith.constant 0 : index
      %c0_18 = arith.constant 0 : index
      %46 = vector.load %arg7[%c0_17, %c0_18] : memref<1x256xf32, #tpu.memory_space<vmem>>, vector<1x256xf32>
      %cst_19 = arith.constant 0.000000e+00 : f32
      %47 = vector.broadcast %cst_19 : f32 to vector<1x256xf32>
      %48 = arith.select %45, %25, %47 : vector<1x256xi1>, vector<1x256xf32>
      %49 = arith.addf %46, %48 : vector<1x256xf32>
      %c0_20 = arith.constant 0 : index
      %c0_21 = arith.constant 0 : index
      %50 = vector.load %arg7[%c0_20, %c0_21] : memref<1x256xf32, #tpu.memory_space<vmem>>, vector<1x256xf32>
      tpu.vector_store %arg7[%c0_20, %c0_21], %49 {strides = array<i32>} : memref<1x256xf32, #tpu.memory_space<vmem>>, vector<1x256xf32>,
      %c0_22 = arith.constant 0 : index
      %c0_23 = arith.constant 0 : index
      %51 = vector.load %arg8[%c0_22, %c0_23] : memref<1x256xf32, #tpu.memory_space<vmem>>, vector<1x256xf32>
      %52 = arith.extui %45 : vector<1x256xi1> to vector<1x256xi32>
      %53 = arith.sitofp %52 : vector<1x256xi32> to vector<1x256xf32>
      %54 = arith.addf %51, %53 : vector<1x256xf32>
      %c0_24 = arith.constant 0 : index
      %c0_25 = arith.constant 0 : index
      %55 = vector.load %arg8[%c0_24, %c0_25] : memref<1x256xf32, #tpu.memory_space<vmem>>, vector<1x256xf32>
      tpu.vector_store %arg8[%c0_24, %c0_25], %54 {strides = array<i32>} : memref<1x256xf32, #tpu.memory_space<vmem>>, vector<1x256xf32>,
    } else {
    }
    %c0_i32_13 = arith.constant 0 : i32
    %36 = arith.cmpi eq, %arg2, %c0_i32_13 : i32
    %37 = arith.extui %36 : i1 to i32
    %c0_i32_14 = arith.constant 0 : i32
    %38 = arith.cmpi ne, %37, %c0_i32_14 : i32
    scf.if %38 {
      %c0_15 = arith.constant 0 : index
      %c0_16 = arith.constant 0 : index
      %39 = vector.load %arg7[%c0_15, %c0_16] : memref<1x256xf32, #tpu.memory_space<vmem>>, vector<1x256xf32>
      %40 = vector.shape_cast %39 : vector<1x256xf32> to vector<1x1x256xf32>
      %cst_17 = arith.constant dense<0.000000e+00> : vector<1xf32>
      %41 = vector.multi_reduction <add>, %40, %cst_17 [1, 2] : vector<1x1x256xf32> to vector<1xf32>
      %42 = vector.shape_cast %41 : vector<1xf32> to vector<1x1x1xf32>
      %43 = vector.extract %42[0, 0, 0] : f32 from vector<1x1x1xf32>
      %44 = vector.broadcast %43 : f32 to vector<1x1x1x1xf32>
      %c0_18 = arith.constant 0 : index
      %c0_19 = arith.constant 0 : index
      %c0_20 = arith.constant 0 : index
      %c0_21 = arith.constant 0 : index
      %45 = vector.load %arg5[%c0_18, %c0_19, %c0_20, %c0_21] : memref<1x1x1x1xf32, #tpu.memory_space<vmem>>, vector<1x1x1x1xf32>
      tpu.vector_store %arg5[%c0_18, %c0_19, %c0_20, %c0_21], %44 {strides = array<i32>} : memref<1x1x1x1xf32, #tpu.memory_space<vmem>>, vector<1x1x1x1xf32>,
      %c0_22 = arith.constant 0 : index
      %c0_23 = arith.constant 0 : index
      %46 = vector.load %arg8[%c0_22, %c0_23] : memref<1x256xf32, #tpu.memory_space<vmem>>, vector<1x256xf32>
      %47 = vector.shape_cast %46 : vector<1x256xf32> to vector<1x1x256xf32>
      %cst_24 = arith.constant dense<0.000000e+00> : vector<1xf32>
      %48 = vector.multi_reduction <add>, %47, %cst_24 [1, 2] : vector<1x1x256xf32> to vector<1xf32>
      %49 = vector.shape_cast %48 : vector<1xf32> to vector<1x1x1xf32>
      %50 = vector.extract %49[0, 0, 0] : f32 from vector<1x1x1xf32>
      %51 = vector.broadcast %50 : f32 to vector<1x1x1x1xf32>
      %c0_25 = arith.constant 0 : index
      %c0_26 = arith.constant 0 : index
      %c0_27 = arith.constant 0 : index
      %c0_28 = arith.constant 0 : index
      %52 = vector.load %arg6[%c0_25, %c0_26, %c0_27, %c0_28] : memref<1x1x1x1xf32, #tpu.memory_space<vmem>>, vector<1x1x1x1xf32>
      tpu.vector_store %arg6[%c0_25, %c0_26, %c0_27, %c0_28], %51 {strides = array<i32>} : memref<1x1x1x1xf32, #tpu.memory_space<vmem>>, vector<1x1x1x1xf32>,
    } else {
    }
    return
  }
  func.func @transform_0(%arg0: i32, %arg1: i32, %arg2: i32) -> (i32, i32, i32) {
    %c1_i32 = arith.constant 1 : i32
    %0 = arith.muli %arg0, %c1_i32 : i32
    %1 = arith.addi %0, %arg2 : i32
    %c0_i32 = arith.constant 0 : i32
    %2 = arith.minsi %1, %c0_i32 : i32
    %c0_i32_0 = arith.constant 0 : i32
    %c0_i32_1 = arith.constant 0 : i32
    return %arg1, %c0_i32_0, %2 : i32, i32, i32
  }
  func.func @transform_1(%arg0: i32, %arg1: i32, %arg2: i32) -> (i32, i32, i32) {
    %c1_i32 = arith.constant 1 : i32
    %0 = arith.muli %arg0, %c1_i32 : i32
    %1 = arith.addi %0, %arg2 : i32
    %c0_i32 = arith.constant 0 : i32
    %2 = arith.minsi %1, %c0_i32 : i32
    %c0_i32_0 = arith.constant 0 : i32
    %c0_i32_1 = arith.constant 0 : i32
    return %arg1, %c0_i32_0, %2 : i32, i32, i32
  }
  func.func @transform_2(%arg0: i32, %arg1: i32, %arg2: i32) -> (i32, i32, i32, i32) {
    %c0_i32 = arith.constant 0 : i32
    %c0_i32_0 = arith.constant 0 : i32
    %c0_i32_1 = arith.constant 0 : i32
    return %arg0, %arg1, %c0_i32, %c0_i32_0 : i32, i32, i32, i32
  }
  func.func @transform_3(%arg0: i32, %arg1: i32, %arg2: i32) -> (i32, i32, i32, i32) {
    %c0_i32 = arith.constant 0 : i32
    %c0_i32_0 = arith.constant 0 : i32
    %c0_i32_1 = arith.constant 0 : i32
    return %arg0, %arg1, %c0_i32, %c0_i32_0 : i32, i32, i32, i32
  }
}

</mosaic_0001>

<llo_original>
// kernel: tpu_custom_call.1
$region0: #{tpu_custom_call.1}
  #allocation0 [shape = 'u32[]', space=smem, size = 0x4, offset = 0x4, fixed_abs, tag = 'smem constant byte address 0x4 - core index']
  #allocation1 [shape = 'u32[144,128]{1,0:T(1,128)}', space=vmem, size = 0x12000, scoped, tag = 'internal scratch']
  #allocation2 [shape = 'f32[1,256]{1,0:T(1,128)}', space=vmem, size = 0x400, scoped, tag = 'scratch operand']
  #allocation3 [shape = 'f32[1,256]{1,0:T(1,128)}', space=vmem, size = 0x400, scoped, tag = 'scratch operand']
  %s0 = inlined_call_operand.hbm [shape: f32[2,4,256], index: 0, kind: input, shape index: {}]
  %s1 = inlined_call_operand.hbm [shape: s32[2,1,256], index: 1, kind: input, shape index: {}]
  %s2 = inlined_call_operand.vmem [shape: f32[1,2,1,1], index: 2, kind: output, shape index: {0}]
  %s3 = inlined_call_operand.vmem [shape: f32[1,2,1,1], index: 3, kind: output, shape index: {1}]
  %4 = xla_tuple %s2, %s3
  %s5 = sld [smem:[#allocation0]]
  $region73: #{tpu_custom_call.1} parent=0
    _
  %s7 = ssub.s32 1, %s5
  %s8 = scalar_select 0, %s7, %s5
  $region1: #{tpu_custom_call.1} parent=0
    #allocation4 [shape = 'u8[8192]{0}', space=vmem, size = 0x2000, scoped, tag = 'input window, operand 0']
    #allocation5 [shape = 's32[2]{0}', space=sflag, size = 0x8, scoped, tag = 'scoped memory for tpu_custom_call.1']
    #allocation6 [shape = 'u8[2048]{0}', space=vmem, size = 0x800, scoped, tag = 'input window, operand 1']
    #allocation7 [shape = 's32[2]{0}', space=sflag, size = 0x8, scoped, tag = 'scoped memory for tpu_custom_call.1']
    %9 = vsyncpa [#allocation5], 0
    %s10 = scalar_lea.sflag [#allocation5], 1
    %11 = vsyncpa %s10, 0
    %12 = vsyncpa [#allocation7], 0
    %s13 = scalar_lea.sflag [#allocation7], 1
    %14 = vsyncpa %s13, 0
    loop: start=0, step=1, limit=4
    $region2: #{tpu_custom_call.1} parent=1 // loop_pre_header
      _
    $region3: #{tpu_custom_call.1} parent=1 // loop_header
      %s16 = sphi 0, %s20
      %p17 = scmp.ge.s32.totalorder %s16, 4
      %s23 = sphi 0, %s42
      %s24 = sphi 0, %s38
      %s25 = sphi 0, %s34
      %s26 = sphi 0, %s23
      %s27 = sphi 0, %s24
      %s28 = sphi 0, %s25
      %s29 = sphi 0, %s26
      %s30 = sphi 0, %s27
      %s31 = sphi 0, %s28
      %s53 = sphi 0, %s55
      %s56 = sphi 0, %s53
      %s57 = sphi 0, %s56
      %s73 = sphi 0, %s57
      %s87 = sphi 0, %s89
      %s90 = sphi 0, %s87
      %s91 = sphi 0, %s90
      %s107 = sphi 0, %s91
      %s115 = sphi 0, %s117
      %s118 = sphi 0, %s115
      %s119 = sphi 0, %s118
      %s135 = sphi 0, %s119
      %s143 = sphi 0, %s145
      %s146 = sphi 0, %s143
      %s147 = sphi 0, %s146
      %s163 = sphi 0, %s147
    $region4: #{tpu_custom_call.1} parent=1 // loop_header_branch
      %19 = sbr.rel (%p17) target = $region8
    $region5: #{tpu_custom_call.1} parent=1 // loop_body
      %s21 = ssub.s32 %s16, 1
      %s22 = ssub.s32 %s16, 2
      %s32 = sadd.s32 1, %s25
      %p33 = scmp.ge.s32.totalorder %s32, 1
      %s34 = scalar_select %p33, 0, %s32
      %s35 = sadd.s32 1, %s24
      %s36 = scalar_select %p33, %s35, %s24
      %p37 = scmp.ge.s32.totalorder %s36, 2
      %s38 = scalar_select %p37, 0, %s36
      %s39 = sadd.s32 1, %s23
      %s40 = scalar_select %p37, %s39, %s23
      %p41 = scmp.ge.s32.totalorder %s40, 1
      %s42 = scalar_select %p41, 0, %s40
      %s43 = sadd.s32 %s23, %s25
      %p44 = scmp.lt.s32.totalorder %s43, 0
      %s45 = scalar_select %p44, %s43, 0
      %s46 = sadd.s32 %s42, %s34
      %p47 = scmp.lt.s32.totalorder %s46, 0
      %s48 = scalar_select %p47, %s46, 0
      %s49 = ssub.s32 %s24, %s38
      %s50 = ssub.s32 %s45, %s48
      %s51 = sor.u32 %s49, %s50
      %p52 = scmp.eq.s32.totalorder %s51, 0
      %s54 = sadd.s32 %s53, 1
      %s55 = scalar_select %p52, %s53, %s54
      %p58 = pneg %p52
      %p59 = scmp.eq.s32.totalorder %s16, 1
      %p60 = por %p58, %p59
      %p61 = scmp.ne.s32.totalorder %s53, %s56
      %p62 = scmp.eq.s32.totalorder %s16, 0
      %p63 = por %p61, %p62
      %p64 = scmp.ne.s32.totalorder %s53, %s56
      %p65 = scmp.eq.s32.totalorder %s21, 1
      %p66 = por %p64, %p65
      %p67 = scmp.ne.s32.totalorder %s56, %s57
      %p68 = scmp.eq.s32.totalorder %s21, 0
      %p69 = por %p67, %p68
      %p70 = scmp.ne.s32.totalorder %s56, %s57
      %p71 = scmp.eq.s32.totalorder %s22, 1
      %p72 = por %p70, %p71
      %p74 = scmp.ne.s32.totalorder %s57, %s73
      %p75 = scmp.eq.s32.totalorder %s22, 0
      %p76 = por %p74, %p75
      %s77 = sadd.s32 %s23, %s25
      %p78 = scmp.lt.s32.totalorder %s77, 0
      %s79 = scalar_select %p78, %s77, 0
      %s80 = sadd.s32 %s42, %s34
      %p81 = scmp.lt.s32.totalorder %s80, 0
      %s82 = scalar_select %p81, %s80, 0
      %s83 = ssub.s32 %s24, %s38
      %s84 = ssub.s32 %s79, %s82
      %s85 = sor.u32 %s83, %s84
      %p86 = scmp.eq.s32.totalorder %s85, 0
      %s88 = sadd.s32 %s87, 1
      %s89 = scalar_select %p86, %s87, %s88
      %p92 = pneg %p86
      %p93 = scmp.eq.s32.totalorder %s16, 1
      %p94 = por %p92, %p93
      %p95 = scmp.ne.s32.totalorder %s87, %s90
      %p96 = scmp.eq.s32.totalorder %s16, 0
      %p97 = por %p95, %p96
      %p98 = scmp.ne.s32.totalorder %s87, %s90
      %p99 = scmp.eq.s32.totalorder %s21, 1
      %p100 = por %p98, %p99
      %p101 = scmp.ne.s32.totalorder %s90, %s91
      %p102 = scmp.eq.s32.totalorder %s21, 0
      %p103 = por %p101, %p102
      %p104 = scmp.ne.s32.totalorder %s90, %s91
      %p105 = scmp.eq.s32.totalorder %s22, 1
      %p106 = por %p104, %p105
      %p108 = scmp.ne.s32.totalorder %s91, %s107
      %p109 = scmp.eq.s32.totalorder %s22, 0
      %p110 = por %p108, %p109
      %s111 = ssub.s32 %s23, %s42
      %s112 = ssub.s32 %s24, %s38
      %s113 = sor.u32 %s111, %s112
      %p114 = scmp.eq.s32.totalorder %s113, 0
      %s116 = sadd.s32 %s115, 1
      %s117 = scalar_select %p114, %s115, %s116
      %p120 = pneg %p114
      %p121 = scmp.eq.s32.totalorder %s16, 1
      %p122 = por %p120, %p121
      %p123 = scmp.ne.s32.totalorder %s115, %s118
      %p124 = scmp.eq.s32.totalorder %s16, 0
      %p125 = por %p123, %p124
      %p126 = scmp.ne.s32.totalorder %s115, %s118
      %p127 = scmp.eq.s32.totalorder %s21, 1
      %p128 = por %p126, %p127
      %p129 = scmp.ne.s32.totalorder %s118, %s119
      %p130 = scmp.eq.s32.totalorder %s21, 0
      %p131 = por %p129, %p130
      %p132 = scmp.ne.s32.totalorder %s118, %s119
      %p133 = scmp.eq.s32.totalorder %s22, 1
      %p134 = por %p132, %p133
      %p136 = scmp.ne.s32.totalorder %s119, %s135
      %p137 = scmp.eq.s32.totalorder %s22, 0
      %p138 = por %p136, %p137
      %s139 = ssub.s32 %s23, %s42
      %s140 = ssub.s32 %s24, %s38
      %s141 = sor.u32 %s139, %s140
      %p142 = scmp.eq.s32.totalorder %s141, 0
      %s144 = sadd.s32 %s143, 1
      %s145 = scalar_select %p142, %s143, %s144
      %p148 = pneg %p142
      %p149 = scmp.eq.s32.totalorder %s16, 1
      %p150 = por %p148, %p149
      %p151 = scmp.ne.s32.totalorder %s143, %s146
      %p152 = scmp.eq.s32.totalorder %s16, 0
      %p153 = por %p151, %p152
      %p154 = scmp.ne.s32.totalorder %s143, %s146
      %p155 = scmp.eq.s32.totalorder %s21, 1
      %p156 = por %p154, %p155
      %p157 = scmp.ne.s32.totalorder %s146, %s147
      %p158 = scmp.eq.s32.totalorder %s21, 0
      %p159 = por %p157, %p158
      %p160 = scmp.ne.s32.totalorder %s146, %s147
      %p161 = scmp.eq.s32.totalorder %s22, 1
      %p162 = por %p160, %p161
      %p164 = scmp.ne.s32.totalorder %s147, %s163
      %p165 = scmp.eq.s32.totalorder %s22, 0
      %p166 = por %p164, %p165
      %p167 = scmp.le.s32.totalorder 1, %s16
      %p168 = scmp.lt.s32.totalorder %s16, 3
      %p169 = pnand %p167, %p168
      %p170 = pneg %p169
      // Predicated region
      $region9: #{tpu_custom_call.1} parent=5 // pred_check
        _
      $region10: #{tpu_custom_call.1} parent=5 // pred_check_branch
        %172 = sbr.rel (%p169) target = $region12
      $region11: #{tpu_custom_call.1} parent=5 // pred_region
        %s173 = ssub.s32 %s16, 1
      $region12: #{tpu_custom_call.1} parent=5 // pred_fallthru
        _
      %p174 = scmp.lt.s32.totalorder %s16, 2
      // Predicated region
      $region13: #{tpu_custom_call.1} parent=5 // pred_check
        %p175 = pneg %p174
      $region14: #{tpu_custom_call.1} parent=5 // pred_check_branch
        %177 = sbr.rel (%p175) target = $region16
      $region15: #{tpu_custom_call.1} parent=5 // pred_region
        // Predicated region
        $region17: #{tpu_custom_call.1} parent=15 // pred_check
          %p178 = pneg %p63
        $region18: #{tpu_custom_call.1} parent=15 // pred_check_branch
          %180 = sbr.rel (%p178) target = $region20
        $region19: #{tpu_custom_call.1} parent=15 // pred_region
          %s181 = sand.u32 %s53, 1
          %s182 = scalar_lea.sflag [#allocation5], %s181
          %s183 = sand.u32 %s53, 1
          %s184 = smul.addr %s183, 8
          %s185 = scalar_lea.vmem [#allocation4], %s184
          %s186 = sadd.s32 %s23, %s25
          %p187 = scmp.lt.s32.totalorder %s186, 0
          %s188 = scalar_select %p187, %s186, 0
          %s189 = smul.u32 2, %s188
          %s191 = ssub.s32 128, 128
          %192 = vsyncadd %s182, %s191
          %s193 = smul.addr %s24, 2
          %s194 = sadd.s32 %s189, %s193
          %s195 = smul.addr %s194, 64
          %s196 = scalar_lea.hbm %s0, %s195
          %s198 = sshll.u32 %s185, 4
          %s199 = int_to_ptr.vmem [resolvable:$true] %s198
          %201 = dma.hbm_to_vmem [thread:$0]  %s196, 128, %s199, %s182
        $region20: #{tpu_custom_call.1} parent=15 // pred_fallthru
          _
        // Predicated region
        $region21: #{tpu_custom_call.1} parent=15 // pred_check
          %p202 = pneg %p97
        $region22: #{tpu_custom_call.1} parent=15 // pred_check_branch
          %204 = sbr.rel (%p202) target = $region24
        $region23: #{tpu_custom_call.1} parent=15 // pred_region
          %s205 = sand.u32 %s87, 1
          %s206 = scalar_lea.sflag [#allocation7], %s205
          %s207 = sand.u32 %s87, 1
          %s208 = smul.addr %s207, 2
          %s209 = scalar_lea.vmem [#allocation6], %s208
          %s210 = sadd.s32 %s23, %s25
          %p211 = scmp.lt.s32.totalorder %s210, 0
          %s212 = scalar_select %p211, %s210, 0
          %s213 = smul.u32 2, %s212
          %s215 = ssub.s32 32, 32
          %216 = vsyncadd %s206, %s215
          %s217 = smul.addr %s24, 2
          %s218 = sadd.s32 %s213, %s217
          %s219 = smul.addr %s218, 16
          %s220 = scalar_lea.hbm %s1, %s219
          %s222 = sshll.u32 %s209, 4
          %s223 = int_to_ptr.vmem [resolvable:$true] %s222
          %225 = dma.hbm_to_vmem [thread:$0]  %s220, 32, %s223, %s206
        $region24: #{tpu_custom_call.1} parent=15 // pred_fallthru
          _
      $region16: #{tpu_custom_call.1} parent=5 // pred_fallthru
        _
      %p226 = scmp.le.s32.totalorder 1, %s16
      %p227 = scmp.lt.s32.totalorder %s16, 3
      %p228 = pnand %p226, %p227
      %p229 = pneg %p228
      // Predicated region
      $region25: #{tpu_custom_call.1} parent=5 // pred_check
        _
      $region26: #{tpu_custom_call.1} parent=5 // pred_check_branch
        %231 = sbr.rel (%p228) target = $region28
      $region27: #{tpu_custom_call.1} parent=5 // pred_region
        %s232 = ssub.s32 %s16, 1
        %s233 = sand.u32 %s56, 1
        %s234 = scalar_lea.sflag [#allocation5], %s233
        %s235 = sand.u32 %s56, 1
        %s236 = smul.addr %s235, 8
        %s237 = scalar_lea.vmem [#allocation4], %s236
        // Predicated region
        $region29: #{tpu_custom_call.1} parent=27 // pred_check
          %p238 = pneg %p69
        $region30: #{tpu_custom_call.1} parent=27 // pred_check_branch
          %240 = sbr.rel (%p238) target = $region32
        $region31: #{tpu_custom_call.1} parent=27 // pred_region
          %241 = dma.done %s234, 128
        $region32: #{tpu_custom_call.1} parent=27 // pred_fallthru
          _
        %s242 = sand.u32 %s90, 1
        %s243 = scalar_lea.sflag [#allocation7], %s242
        %s244 = sand.u32 %s90, 1
        %s245 = smul.addr %s244, 2
        %s246 = scalar_lea.vmem [#allocation6], %s245
        // Predicated region
        $region33: #{tpu_custom_call.1} parent=27 // pred_check
          %p247 = pneg %p103
        $region34: #{tpu_custom_call.1} parent=27 // pred_check_branch
          %249 = sbr.rel (%p247) target = $region36
        $region35: #{tpu_custom_call.1} parent=27 // pred_region
          %250 = dma.done %s243, 32
        $region36: #{tpu_custom_call.1} parent=27 // pred_fallthru
          _
        %s251 = sand.u32 %s56, 1
        %s252 = scalar_lea.sflag [#allocation5], %s251
        %s253 = sand.u32 %s56, 1
        %s254 = smul.addr %s253, 8
        %s255 = scalar_lea.vmem [#allocation4], %s254
        %p256 = pneg %p69
        %p257 = pneg %p66
        %s258 = sand.u32 %s90, 1
        %s259 = scalar_lea.sflag [#allocation7], %s258
        %s260 = sand.u32 %s90, 1
        %s261 = smul.addr %s260, 2
        %s262 = scalar_lea.vmem [#allocation6], %s261
        %p263 = pneg %p103
        %p264 = pneg %p100
        %p265 = pneg %p131
        %p266 = pneg %p128
        %p267 = scmp.lt.s32.totalorder %s26, 0
        %s268 = scalar_select %p267, %s26, 0
        %p269 = scmp.lt.s32.totalorder %s27, 1
        %s270 = scalar_select %p269, %s27, 1
        %s271 = smul.addr %s268, 2
        %s272 = sadd.s32 %s270, %s271
        %s273 = scalar_lea.vmem %s2, %s272
        %p274 = pneg %p159
        %p275 = pneg %p156
        %p276 = scmp.lt.s32.totalorder %s26, 0
        %s277 = scalar_select %p276, %s26, 0
        %p278 = scmp.lt.s32.totalorder %s27, 1
        %s279 = scalar_select %p278, %s27, 1
        %s280 = smul.addr %s277, 2
        %s281 = sadd.s32 %s279, %s280
        %s282 = scalar_lea.vmem %s3, %s281
        %s283 = sadd.s32 %s26, %s28
        %p284 = scmp.lt.s32.totalorder %s283, 0
        %s285 = scalar_select %p284, %s283, 0
        %s286 = smul.u32 2, %s285
        %s287 = sadd.s32 %s26, %s28
        %p288 = scmp.lt.s32.totalorder %s287, 0
        %s289 = scalar_select %p288, %s287, 0
        %s290 = smul.u32 2, %s289
        %p291 = scmp.lt.s32.totalorder %s26, 0
        %s292 = scalar_select %p291, %s26, 0
        %p293 = scmp.lt.s32.totalorder %s27, 1
        %s294 = scalar_select %p293, %s27, 1
        %s295 = smul.addr %s292, 2
        %s296 = sadd.s32 %s294, %s295
        %s297 = scalar_lea.vmem %s2, %s296
        %p298 = scmp.lt.s32.totalorder %s26, 0
        %s299 = scalar_select %p298, %s26, 0
        %p300 = scmp.lt.s32.totalorder %s27, 1
        %s301 = scalar_select %p300, %s27, 1
        %s302 = smul.addr %s299, 2
        %s303 = sadd.s32 %s301, %s302
        %s304 = scalar_lea.vmem %s3, %s303
        %p305 = scmp.eq.s32.totalorder %s28, 0
        // Predicated region
        $region37: #{tpu_custom_call.1} parent=27 // pred_check
          %p306 = pneg %p305
        $region38: #{tpu_custom_call.1} parent=27 // pred_check_branch
          %308 = sbr.rel (%p306) target = $region40
        $region39: #{tpu_custom_call.1} parent=27 // pred_region
          %v309 = vlaneseq
          %vm310 = vcmp.ge.s32.totalorder %v309, 0
          %vm311 = vcmp.lt.s32.totalorder %v309, 256
          %vm312 = vmand %vm310, %vm311
          %313 = vst.msk [vmem:[#allocation2] sm:$0x3] %vm312, 0.0
          %314 = vst.msk [vmem:[#allocation3] sm:$0x3] %vm312, 0.0
        $region40: #{tpu_custom_call.1} parent=27 // pred_fallthru
          _
        %v315 = vld [vmem:[%s237] sm:$0xff]
        %v316 = vld [vmem:[%s246] sm:$0x3]
        %s317 = sadd.s32 %s26, %s28
        %v319 = vcombine.high %v315, %v315
        %vm321 = vcmask 1043456
        %v322 = vsel %vm321, %v315, -inf
        %v323 = vrot.slane %v322, 4
        %v324 = vmax.f32 %v322, %v323
        %v325 = vrot.slane %v324, 2
        %v326 = vmax.f32 %v324, %v325
        %v327 = vrot.slane %v326, 1
        %v328 = vmax.f32 %v326, %v327
        %v329 = vsel %vm321, %v319, -inf
        %v330 = vrot.slane %v329, 4
        %v331 = vmax.f32 %v329, %v330
        %v332 = vrot.slane %v331, 2
        %v333 = vmax.f32 %v331, %v332
        %v334 = vrot.slane %v333, 1
        %v335 = vmax.f32 %v333, %v334
        %v338 = vcombine.low %v328, %v335
        %v340 = vsub.f32 %v315, %v338
        %v341 = vmul.f32 %v340, 1.442695
        %v342 = vpow.pop %v341
        %v344 = vcombine.high %v342, %v342
        %v346 = vsel %vm321, %v342, 0.0
        %v347 = vrot.slane %v346, 4
        %v348 = vadd.f32 %v346, %v347
        %v349 = vrot.slane %v348, 2
        %v350 = vadd.f32 %v348, %v349
        %v351 = vrot.slane %v350, 1
        %v352 = vadd.f32 %v350, %v351
        %v353 = vsel %vm321, %v344, 0.0
        %v354 = vrot.slane %v353, 4
        %v355 = vadd.f32 %v353, %v354
        %v356 = vrot.slane %v355, 2
        %v357 = vadd.f32 %v355, %v356
        %v358 = vrot.slane %v357, 1
        %v359 = vadd.f32 %v357, %v358
        %v360 = vlog2.pop %v352
        %v361 = vmul.f32 %v360, 0.6931472
        %v362 = vlog2.pop %v359
        %v363 = vmul.f32 %v362, 0.6931472
        %v364 = vlaneseq
        %v365 = vshrl.u32 %v364, 7
        %v366 = vlaneseq
        %v367 = vshrl.u32 %v366, 7
        %v368 = vsub.s32 0, %v367
        %v369 = vrot.slane %v316, %v368
        %v370 = vlaneseq
        %v371 = vshrl.u32 %v370, 7
        %v372 = vsub.s32 1, %v371
        %v373 = vrot.slane %v316, %v372
        %vm374 = vcmp.eq.s32.totalorder %v365, %v369
        %vm375 = vcmp.eq.s32.totalorder %v365, %v373
        %v377 = vcombine.high %v340, %v340
        %v379 = vsel %vm374, %v340, 0.0
        %v380 = vsel %vm375, %v377, 0.0
        %v381 = vsel %vm321, %v379, 0.0
        %v382 = vrot.slane %v381, 4
        %v383 = vadd.f32 %v381, %v382
        %v384 = vrot.slane %v383, 2
        %v385 = vadd.f32 %v383, %v384
        %v386 = vrot.slane %v385, 1
        %v387 = vadd.f32 %v385, %v386
        %v388 = vsel %vm321, %v380, 0.0
        %v389 = vrot.slane %v388, 4
        %v390 = vadd.f32 %v388, %v389
        %v391 = vrot.slane %v390, 2
        %v392 = vadd.f32 %v390, %v391
        %v393 = vrot.slane %v392, 1
        %v394 = vadd.f32 %v392, %v393
        %v395 = vsub.f32 %v361, %v387
        %v396 = vsub.f32 %v363, %v394
        %vm397 = vcmp.ne.s32.totalorder %v316, 4294967196
        %s398 = sadd.s32 %s317, 1
        %s399 = smul.u32 %s398, 256
        %p400 = scmp.le.s32.totalorder %s399, 256
        // Predicated region
        $region41: #{tpu_custom_call.1} parent=27 // pred_check
          %p401 = pneg %p400
        $region42: #{tpu_custom_call.1} parent=27 // pred_check_branch
          %403 = sbr.rel (%p401) target = $region44
        $region43: #{tpu_custom_call.1} parent=27 // pred_region
          %v404 = vld [vmem:[#allocation2] sm:$0x3]
          %v407 = vcombine.low %v395, %v396
          %v409 = vunpack.c.l.s4 1966171168
          %v410 = vunpack.c.0.s8 %v409
          %v411 = vlaneseq
          %v412 = vshrl.u32 %v411, 7
          %v413 = vsub.s32 %v410, %v412
          %v414 = vrot.slane %v407, %v413
          %v416 = vunpack.c.l.s4 1966171168
          %v417 = vunpack.c.0.s8 %v416
          %v418 = vlaneseq
          %v419 = vshrl.u32 %v418, 7
          %v420 = vsub.s32 %v417, %v419
          %v421 = vrot.slane %v414, %v420
          %v423 = vsel %vm397, %v421, 0.0
          %v424 = vadd.f32 %v404, %v423
          %v425 = vlaneseq
          %vm426 = vcmp.ge.s32.totalorder %v425, 0
          %vm427 = vcmp.lt.s32.totalorder %v425, 256
          %vm428 = vmand %vm426, %vm427
          %429 = vst.msk [vmem:[#allocation2] sm:$0x3] %vm428, %v424
          %v430 = vld [vmem:[#allocation3] sm:$0x3]
          %v431 = vsel %vm397, 1, 0
          %v432 = vcvt.s32.f32 %v431
          %v433 = vadd.f32 %v430, %v432
          %434 = vst.msk [vmem:[#allocation3] sm:$0x3] %vm428, %v433
        $region44: #{tpu_custom_call.1} parent=27 // pred_fallthru
          _
        %p435 = scmp.gt.s32.totalorder %s399, 256
        // Predicated region
        $region45: #{tpu_custom_call.1} parent=27 // pred_check
          %p436 = pneg %p435
        $region46: #{tpu_custom_call.1} parent=27 // pred_check_branch
          %438 = sbr.rel (%p436) target = $region48
        $region47: #{tpu_custom_call.1} parent=27 // pred_region
          %v439 = vlaneseq
          %v440 = vand.u32 %v439, 127
          %v441 = vadd.s32 %v440, 128
          %s442 = smul.u32 %s317, 256
          %v443 = vstv %s442
          %v444 = vadd.s32 %v443, %v440
          %v445 = vadd.s32 %v443, %v441
          %vm446 = vcmp.lt.s32.totalorder %v444, 256
          %vm447 = vcmp.lt.s32.totalorder %v445, 256
          %v448 = vsel %vm397, 1, 0
          %v449 = vlaneseq
          %v450 = vshrl.u32 %v449, 7
          %v451 = vsub.s32 0, %v450
          %v452 = vrot.slane %v448, %v451
          %v453 = vlaneseq
          %v454 = vshrl.u32 %v453, 7
          %v455 = vsub.s32 1, %v454
          %v456 = vrot.slane %v448, %v455
          %vm457 = vcmp.ne.s32.totalorder %v452, 0
          %vm458 = vcmp.ne.s32.totalorder %v456, 0
          %vm459 = vmand %vm446, %vm457
          %vm460 = vmand %vm447, %vm458
          %v461 = vld [vmem:[#allocation2] sm:$0x3]
          %v462 = vsel %vm459, %v395, 0.0
          %v463 = vsel %vm460, %v396, 0.0
          %v466 = vcombine.low %v462, %v463
          %v468 = vunpack.c.l.s4 1966171168
          %v469 = vunpack.c.0.s8 %v468
          %v470 = vlaneseq
          %v471 = vshrl.u32 %v470, 7
          %v472 = vsub.s32 %v469, %v471
          %v473 = vrot.slane %v466, %v472
          %v475 = vunpack.c.l.s4 1966171168
          %v476 = vunpack.c.0.s8 %v475
          %v477 = vlaneseq
          %v478 = vshrl.u32 %v477, 7
          %v479 = vsub.s32 %v476, %v478
          %v480 = vrot.slane %v473, %v479
          %v482 = vadd.f32 %v461, %v480
          %v483 = vlaneseq
          %vm484 = vcmp.ge.s32.totalorder %v483, 0
          %vm485 = vcmp.lt.s32.totalorder %v483, 256
          %vm486 = vmand %vm484, %vm485
          %487 = vst.msk [vmem:[#allocation2] sm:$0x3] %vm486, %v482
          %v488 = vld [vmem:[#allocation3] sm:$0x3]
          %v489 = vsel %vm459, 1, 0
          %v490 = vsel %vm460, 1, 0
          %v491 = vcvt.s32.f32 %v489
          %v492 = vcvt.s32.f32 %v490
          %v495 = vcombine.low %v491, %v492
          %v497 = vunpack.c.l.s4 1966171168
          %v498 = vunpack.c.0.s8 %v497
          %v499 = vlaneseq
          %v500 = vshrl.u32 %v499, 7
          %v501 = vsub.s32 %v498, %v500
          %v502 = vrot.slane %v495, %v501
          %v504 = vunpack.c.l.s4 1966171168
          %v505 = vunpack.c.0.s8 %v504
          %v506 = vlaneseq
          %v507 = vshrl.u32 %v506, 7
          %v508 = vsub.s32 %v505, %v507
          %v509 = vrot.slane %v502, %v508
          %v511 = vadd.f32 %v488, %v509
          %512 = vst.msk [vmem:[#allocation3] sm:$0x3] %vm486, %v511
        $region48: #{tpu_custom_call.1} parent=27 // pred_fallthru
          _
        // Predicated region
        $region49: #{tpu_custom_call.1} parent=27 // pred_check
          %p513 = pneg %p305
        $region50: #{tpu_custom_call.1} parent=27 // pred_check_branch
          %515 = sbr.rel (%p513) target = $region52
        $region51: #{tpu_custom_call.1} parent=27 // pred_region
          %v516 = vld [vmem:[#allocation2] sm:$0x3]
          %v518 = vlaneseq
          %v519 = vshrl.u32 %v518, 7
          %v520 = vsub.s32 0, %v519
          %v521 = vrot.slane %v516, %v520
          %v522 = vlaneseq
          %v523 = vshrl.u32 %v522, 7
          %v524 = vsub.s32 1, %v523
          %v525 = vrot.slane %v516, %v524
          %vm528 = vcmask 1040384
          %v529 = vsel %vm528, %v521, 0.0
          %v530 = vsel %vm528, %v525, 0.0
          %v531 = vadd.f32 %v529, %v530
          %532 = vadd.xlane.f32.xlu0 %v531
          %v533 = vpop.xlane.xlu0 %532
          %v534 = vrot.slane %v533, 4
          %v535 = vadd.f32 %v533, %v534
          %v536 = vrot.slane %v535, 2
          %v537 = vadd.f32 %v535, %v536
          %v538 = vrot.slane %v537, 1
          %v539 = vadd.f32 %v537, %v538
          %s540 = vtos %v539
          %v541 = vstv %s540
          %vm542 = vcmask 0
          %543 = vst.msk [vmem:[%s297] sm:$0x1] %vm542, %v541
          %v544 = vld [vmem:[#allocation3] sm:$0x3]
          %v546 = vlaneseq
          %v547 = vshrl.u32 %v546, 7
          %v548 = vsub.s32 0, %v547
          %v549 = vrot.slane %v544, %v548
          %v550 = vlaneseq
          %v551 = vshrl.u32 %v550, 7
          %v552 = vsub.s32 1, %v551
          %v553 = vrot.slane %v544, %v552
          %v556 = vsel %vm528, %v549, 0.0
          %v557 = vsel %vm528, %v553, 0.0
          %v558 = vadd.f32 %v556, %v557
          %559 = vadd.xlane.f32.xlu0 %v558
          %v560 = vpop.xlane.xlu0 %559
          %v561 = vrot.slane %v560, 4
          %v562 = vadd.f32 %v560, %v561
          %v563 = vrot.slane %v562, 2
          %v564 = vadd.f32 %v562, %v563
          %v565 = vrot.slane %v564, 1
          %v566 = vadd.f32 %v564, %v565
          %s567 = vtos %v566
          %v568 = vstv %s567
          %569 = vst.msk [vmem:[%s304] sm:$0x1] %vm542, %v568
        $region52: #{tpu_custom_call.1} parent=27 // pred_fallthru
          _
        %p570 = scmp.lt.s32.totalorder %s26, 0
        %s571 = scalar_select %p570, %s26, 0
        %p572 = scmp.lt.s32.totalorder %s27, 1
        %s573 = scalar_select %p572, %s27, 1
        %s574 = smul.addr %s571, 2
        %s575 = sadd.s32 %s573, %s574
        %s576 = scalar_lea.vmem %s2, %s575
        %p577 = scmp.lt.s32.totalorder %s26, 0
        %s578 = scalar_select %p577, %s26, 0
        %p579 = scmp.lt.s32.totalorder %s27, 1
        %s580 = scalar_select %p579, %s27, 1
        %s581 = smul.addr %s578, 2
        %s582 = sadd.s32 %s580, %s581
        %s583 = scalar_lea.vmem %s3, %s582
        // Predicated region
        $region53: #{tpu_custom_call.1} parent=27 // pred_check
          %p584 = pneg %p128
        $region54: #{tpu_custom_call.1} parent=27 // pred_check_branch
          %586 = sbr.rel (%p584) target = $region56
        $region55: #{tpu_custom_call.1} parent=27 // pred_region
          _
        $region56: #{tpu_custom_call.1} parent=27 // pred_fallthru
          _
        // Predicated region
        $region57: #{tpu_custom_call.1} parent=27 // pred_check
          %p587 = pneg %p156
        $region58: #{tpu_custom_call.1} parent=27 // pred_check_branch
          %589 = sbr.rel (%p587) target = $region60
        $region59: #{tpu_custom_call.1} parent=27 // pred_region
          _
        $region60: #{tpu_custom_call.1} parent=27 // pred_fallthru
          _
      $region28: #{tpu_custom_call.1} parent=5 // pred_fallthru
        _
      %p590 = scmp.le.s32.totalorder 2, %s16
      // Predicated region
      $region61: #{tpu_custom_call.1} parent=5 // pred_check
        %p591 = pneg %p590
      $region62: #{tpu_custom_call.1} parent=5 // pred_check_branch
        %593 = sbr.rel (%p591) target = $region64
      $region63: #{tpu_custom_call.1} parent=5 // pred_region
        %s594 = ssub.s32 %s16, 2
        // Predicated region
        $region65: #{tpu_custom_call.1} parent=63 // pred_check
          %p595 = pneg %p134
        $region66: #{tpu_custom_call.1} parent=63 // pred_check_branch
          %597 = sbr.rel (%p595) target = $region68
        $region67: #{tpu_custom_call.1} parent=63 // pred_region
          %p598 = scmp.lt.s32.totalorder %s29, 0
          %s599 = scalar_select %p598, %s29, 0
          %p600 = scmp.lt.s32.totalorder %s30, 1
          %s601 = scalar_select %p600, %s30, 1
          %s602 = smul.addr %s599, 2
          %s603 = sadd.s32 %s601, %s602
          %s604 = scalar_lea.vmem %s2, %s603
        $region68: #{tpu_custom_call.1} parent=63 // pred_fallthru
          _
        // Predicated region
        $region69: #{tpu_custom_call.1} parent=63 // pred_check
          %p605 = pneg %p162
        $region70: #{tpu_custom_call.1} parent=63 // pred_check_branch
          %607 = sbr.rel (%p605) target = $region72
        $region71: #{tpu_custom_call.1} parent=63 // pred_region
          %p608 = scmp.lt.s32.totalorder %s29, 0
          %s609 = scalar_select %p608, %s29, 0
          %p610 = scmp.lt.s32.totalorder %s30, 1
          %s611 = scalar_select %p610, %s30, 1
          %s612 = smul.addr %s609, 2
          %s613 = sadd.s32 %s611, %s612
          %s614 = scalar_lea.vmem %s3, %s613
        $region72: #{tpu_custom_call.1} parent=63 // pred_fallthru
          _
      $region64: #{tpu_custom_call.1} parent=5 // pred_fallthru
        _
    $region6: #{tpu_custom_call.1} parent=1 // loop_footer
      %s20 = sadd.s32 1, %s16
    $region7: #{tpu_custom_call.1} parent=1 // loop_footer_branch
      %15 = sbr.rel target = $region3
    $region8: #{tpu_custom_call.1} parent=1 // loop_exit
      _
    %615 = vsyncpa [#allocation5], 1
    %s616 = scalar_lea.sflag [#allocation5], 1
    %617 = vsyncpa %s616, 1
    %618 = vsyncpa [#allocation7], 1
    %s619 = scalar_lea.sflag [#allocation7], 1
    %620 = vsyncpa %s619, 1

</llo_original>
